<compile_context>
chip_gen: v6e
topology: v6e:2x2x1
jax: 0.10.0
libtpu: 0.0.40
codegen_flags: <defaults>
</compile_context>

<pallas_src>
import functools

import numpy as np
import jax
import jax.numpy as jnp
from jax import lax
from jax.experimental import pallas as pl
from jax.experimental.pallas import tpu as pltpu


def _odt_kernel(x_ref, w_ref, b_ref, leaf_ref, out_ref, *, tree_depth):
    # x_ref:    [TB, D]   batch tile (f32 or bf16 storage)
    # w_ref:    [Tp, D]   zero-padded decision weights, same dtype as x
    # b_ref:    [Tp, 1]   zero-padded decision bias (f32)
    # leaf_ref: [1, L]    leaf values (f32), L = 2**tree_depth
    # out_ref:  [1, TB]   lane-dense output tile (f32)

    # Decisions with batch on the lane axis.  Contraction over D is expressed
    # directly (lhs dim 1 with rhs dim 1), so Mosaic folds the "transpose" into
    # MXU operand staging instead of relaying out the whole x tile.  Operands
    # stay in their storage dtype; accumulation is f32.
    logits_t = lax.dot_general(
        w_ref[...], x_ref[...],
        dimension_numbers=(((1,), (1,)), ((), ())),
        preferred_element_type=jnp.float32)                       # [Tp, TB]
    d = jax.nn.sigmoid(logits_t + b_ref[...])                     # [Tp, TB] f32
    nd = 1.0 - d

    # Leaf probabilities by recursive doubling over depth.  Processing the MSB
    # (depth 0) last makes row k of the final [L, TB] block equal leaf k in the
    # reference's MSB-first code ordering, so leaf_values are used unpermuted.
    # Each step is a sublane concat + a row([1,TB])-broadcast multiply; there
    # are no [L, 1] -> [L, TB] lane broadcasts.
    t = tree_depth - 1
    p = jnp.concatenate([nd[t:t + 1, :], d[t:t + 1, :]], axis=0)   # [2, TB]
    for t in range(tree_depth - 2, -1, -1):
        p = jnp.concatenate([p * nd[t:t + 1, :], p * d[t:t + 1, :]], axis=0)

    # Weighted sum over leaves on the MXU -> lane-dense [1, TB] store.
    out_ref[...] = jnp.dot(leaf_ref[...], p,
                           preferred_element_type=jnp.float32
                           ).astype(out_ref.dtype)


def oblivious_decision_tree(x, weight, bias, leaf_values, tree_depth,
                            *, block_b=16 * 1024, input_dtype=None):
    """Forward pass of ObliviousDecisionTree.

    x:           [B, input_dim]
    weight:      [tree_depth, input_dim]   (PyTorch nn.Linear layout)
    bias:        [tree_depth]
    leaf_values: [2 ** tree_depth]
    Returns [B, 1] float32.

    block_b: max batch-tile rows (multiple of 128).  Default 16K rows moves
      ~2 MiB of f32 x per grid step (4-8 MiB with bf16 / bigger block_b),
      amortizing per-step pipeline overhead on all generations while staying
      well inside v7x's 64 MiB per-TC VMEM.
    input_dtype: storage dtype for x (and the decision weights).  bfloat16 is
      recommended on v5e (halves HBM bytes for x, the real bottleneck there);
      all post-matmul math stays f32.
    """
    B, D = x.shape
    T = int(tree_depth)
    L = 2 ** T
    assert T >= 1
    assert weight.shape == (T, D)
    assert bias.shape == (T,)
    assert leaf_values.shape == (L,)

    if input_dtype is None:
        input_dtype = jnp.float32
    input_dtype = jnp.dtype(input_dtype)

    # Pad tree depth to a sublane multiple so the [Tp, TB] decision tile is
    # clean.  Padded weight rows are zero and never read in the product loop.
    Tp = ((T + 7) // 8) * 8

    # Weights share x's dtype so the MXU sees a homogeneous bf16 or f32 matmul.
    w = jnp.zeros((Tp, D), input_dtype).at[:T].set(
        jnp.asarray(weight, jnp.float32).astype(input_dtype))
    b = jnp.zeros((Tp, 1), jnp.float32).at[:T, 0].set(
        jnp.asarray(bias, jnp.float32))
    leaf = jnp.asarray(leaf_values, jnp.float32).reshape(1, L)

    x = jnp.asarray(x, input_dtype)

    # Batch tiling: whole batch as one tile when small; otherwise big
    # lane-dense tiles (multiple of 128), never more than half the batch so
    # the grid keeps >= 2 steps (pipelining + v7x megacore).
    block_b = max(128, (int(block_b) // 128) * 128)
    if B <= 1024:
        TB, Bp = B, B
    else:
        half = 128 * pl.cdiv(pl.cdiv(B, 2), 128)
        TB = min(block_b, half)
        Bp = pl.cdiv(B, TB) * TB
    if Bp != B:
        x = jnp.pad(x, ((0, Bp - B), (0, 0)))
    grid = (Bp // TB,)

    # VMEM budget: the [TB, D] tile is lane-padded to 128 lanes (4x for D=32)
    # and double-buffered; kernel intermediates (logits, d, 1-d, the doubling
    # pyramid) are f32 rows x TB lanes.  Cap at 48 MiB so a tile sized here is
    # also safe on v7x's 64 MiB per-TC VMEM.
    x_buf_bytes = 2 * TB * 128 * input_dtype.itemsize
    inter_bytes = (4 * Tp + 3 * L + 16) * TB * 4
    vmem_limit = int(min(48 * 1024 * 1024,
                         max(32 * 1024 * 1024,
                             1.5 * (x_buf_bytes + inter_bytes))))

    def bcast(shape):
        return pl.BlockSpec(shape, lambda i: (0, 0))

    kernel = functools.partial(_odt_kernel, tree_depth=T)

    out = pl.pallas_call(
        kernel,
        out_shape=jax.ShapeDtypeStruct((1, Bp), jnp.float32),
        grid=grid,
        in_specs=[
            pl.BlockSpec((TB, D), lambda i: (i, 0)),   # x: batch-tiled
            bcast((Tp, D)),                            # decision weights
            bcast((Tp, 1)),                            # decision bias
            bcast((1, L)),                             # leaf values
        ],
        out_specs=pl.BlockSpec((1, TB), lambda i: (0, i)),
        compiler_params=pltpu.CompilerParams(
            dimension_semantics=("parallel",),
            vmem_limit_bytes=vmem_limit,
        ),
    )(x, w, b, leaf)

    return out[0, :B].reshape(B, 1)


def _reference(x, weight, bias, leaf_values, tree_depth):
    T = int(tree_depth)
    L = 2 ** T
    logits = jnp.dot(x, weight.T, precision=lax.Precision.HIGHEST) + bias
    decisions = jax.nn.sigmoid(logits)                              # [B, T]
    codes = jnp.asarray(np.array(
        [[(i >> (T - 1 - t)) & 1 for t in range(T)] for i in range(L)],
        dtype=np.float32))                                          # [L, T]
    d = decisions[:, None, :]
    c = codes[None, :, :]
    leaf_probs = jnp.prod(d * c + (1 - d) * (1 - c), axis=2)        # [B, L]
    return jnp.sum(leaf_probs * leaf_values[None, :], axis=1, keepdims=True)


if __name__ == "__main__":
    key = jax.random.PRNGKey(0)
    input_dim, tree_depth = 32, 4
    k_x1, k_x2, k_w, k_b, k_l = jax.random.split(key, 5)

    weight = jax.random.normal(k_w, (tree_depth, input_dim), jnp.float32) * 0.1
    bias = jax.random.normal(k_b, (tree_depth,), jnp.float32) * 0.1
    leaf_values = jax.random.normal(k_l, (2 ** tree_depth,), jnp.float32)

    # 1) Small batch (single tile), module-sized shapes, f32 MXU path.
    x_small = jax.random.normal(k_x1, (8, input_dim), jnp.float32)
    out_small = jax.block_until_ready(
        oblivious_decision_tree(x_small, weight, bias, leaf_values, tree_depth))
    ref_small = _reference(x_small, weight, bias, leaf_values, tree_depth)
    assert out_small.shape == (8, 1)
    np.testing.assert_allclose(np.asarray(out_small), np.asarray(ref_small),
                               rtol=1e-4, atol=1e-4)

    # 2) Larger batch exercising the tiled grid (>= 2 steps) + a padded tail.
    x_big = jax.random.normal(k_x2, (2348, input_dim), jnp.float32)
    out_big = jax.block_until_ready(
        oblivious_decision_tree(x_big, weight, bias, leaf_values, tree_depth))
    ref_big = _reference(x_big, weight, bias, leaf_values, tree_depth)
    assert out_big.shape == (2348, 1)
    np.testing.assert_allclose(np.asarray(out_big), np.asarray(ref_big),
                               rtol=1e-4, atol=1e-4)

    # 3) bf16 input storage: bf16 x / bf16 W straight into the MXU with f32
    #    accumulation (recommended on v5e; halves x HBM bytes everywhere).
    out_bf16 = jax.block_until_ready(
        oblivious_decision_tree(x_big, weight, bias, leaf_values, tree_depth,
                                input_dtype=jnp.bfloat16))
    ref_bf16 = _reference(
        x_big.astype(jnp.bfloat16).astype(jnp.float32),
        weight.astype(jnp.bfloat16).astype(jnp.float32),
        bias, leaf_values, tree_depth)
    np.testing.assert_allclose(np.asarray(out_bf16), np.asarray(ref_bf16),
                               rtol=2e-3, atol=2e-3)

    print("KERNEL_OK")
</pallas_src>

<mosaic_0001>
module attributes {stable_mosaic.version = 11 : i64} {
  func.func @_odt_kernel(%arg0: i32, %arg1: memref<8x32xf32, #tpu.memory_space<vmem>>, %arg2: memref<8x32xf32, #tpu.memory_space<vmem>>, %arg3: memref<8x1xf32, #tpu.memory_space<vmem>>, %arg4: memref<1x16xf32, #tpu.memory_space<vmem>>, %arg5: memref<1x8xf32, #tpu.memory_space<vmem>>) attributes {dimension_semantics = [#tpu.dimension_semantics<parallel>], iteration_bounds = array<i64: 1>, scalar_prefetch = 0 : i64, scratch_operands = 0 : i64, tpu.core_type = #tpu.core_type<tc>, window_params = [{transform_indices = @transform_0, window_bounds = array<i64: 8, 32>}, {pipeline_mode = #tpu.pipeline_mode<synchronous>, transform_indices = @transform_1, window_bounds = array<i64: 8, 32>}, {pipeline_mode = #tpu.pipeline_mode<synchronous>, transform_indices = @transform_2, window_bounds = array<i64: 8, 1>}, {pipeline_mode = #tpu.pipeline_mode<synchronous>, transform_indices = @transform_3, window_bounds = array<i64: 1, 16>}, {transform_indices = @transform_4, window_bounds = array<i64: 1, 8>}]} {
    %c0 = arith.constant 0 : index
    %c0_0 = arith.constant 0 : index
    %0 = vector.load %arg2[%c0, %c0_0] : memref<8x32xf32, #tpu.memory_space<vmem>>, vector<8x32xf32>
    %c0_1 = arith.constant 0 : index
    %c0_2 = arith.constant 0 : index
    %1 = vector.load %arg1[%c0_1, %c0_2] : memref<8x32xf32, #tpu.memory_space<vmem>>, vector<8x32xf32>
    %cst = arith.constant dense<0.000000e+00> : vector<8x8xf32>
    %2 = tpu.matmul %0, %1, %cst {dimension_numbers = #tpu.dot_dimension_numbers<[1], [1], [0], [0], [0, 0, 1, 0], [], []>} : vector<8x32xf32>, vector<8x32xf32>, vector<8x8xf32> -> vector<8x8xf32>
    %c0_3 = arith.constant 0 : index
    %c0_4 = arith.constant 0 : index
    %3 = vector.load %arg3[%c0_3, %c0_4] : memref<8x1xf32, #tpu.memory_space<vmem>>, vector<8x1xf32>
    %4 = vector.broadcast %3 : vector<8x1xf32> to vector<8x8xf32>
    %5 = arith.addf %2, %4 : vector<8x8xf32>
    %6 = arith.negf %5 : vector<8x8xf32>
    %7 = math.exp %6 : vector<8x8xf32>
    %cst_5 = arith.constant 1.000000e+00 : f32
    %8 = vector.broadcast %cst_5 : f32 to vector<8x8xf32>
    %9 = arith.addf %8, %7 : vector<8x8xf32>
    %10 = arith.divf %8, %9 : vector<8x8xf32>
    %cst_6 = arith.constant 1.000000e+00 : f32
    %11 = vector.broadcast %cst_6 : f32 to vector<8x8xf32>
    %12 = arith.subf %11, %10 : vector<8x8xf32>
    %13 = vector.extract_strided_slice %12 {offsets = [3, 0], sizes = [1, 8], strides = [1, 1]} : vector<8x8xf32> to vector<1x8xf32>
    %14 = vector.extract_strided_slice %10 {offsets = [3, 0], sizes = [1, 8], strides = [1, 1]} : vector<8x8xf32> to vector<1x8xf32>
    %15 = tpu.concatenate %13, %14 in 0 : vector<1x8xf32>, vector<1x8xf32> -> vector<2x8xf32>
    %16 = vector.extract_strided_slice %12 {offsets = [2, 0], sizes = [1, 8], strides = [1, 1]} : vector<8x8xf32> to vector<1x8xf32>
    %17 = vector.broadcast %16 : vector<1x8xf32> to vector<2x8xf32>
    %18 = arith.mulf %15, %17 : vector<2x8xf32>
    %19 = vector.extract_strided_slice %10 {offsets = [2, 0], sizes = [1, 8], strides = [1, 1]} : vector<8x8xf32> to vector<1x8xf32>
    %20 = vector.broadcast %19 : vector<1x8xf32> to vector<2x8xf32>
    %21 = arith.mulf %15, %20 : vector<2x8xf32>
    %22 = tpu.concatenate %18, %21 in 0 : vector<2x8xf32>, vector<2x8xf32> -> vector<4x8xf32>
    %23 = vector.extract_strided_slice %12 {offsets = [1, 0], sizes = [1, 8], strides = [1, 1]} : vector<8x8xf32> to vector<1x8xf32>
    %24 = vector.broadcast %23 : vector<1x8xf32> to vector<4x8xf32>
    %25 = arith.mulf %22, %24 : vector<4x8xf32>
    %26 = vector.extract_strided_slice %10 {offsets = [1, 0], sizes = [1, 8], strides = [1, 1]} : vector<8x8xf32> to vector<1x8xf32>
    %27 = vector.broadcast %26 : vector<1x8xf32> to vector<4x8xf32>
    %28 = arith.mulf %22, %27 : vector<4x8xf32>
    %29 = tpu.concatenate %25, %28 in 0 : vector<4x8xf32>, vector<4x8xf32> -> vector<8x8xf32>
    %30 = vector.extract_strided_slice %12 {offsets = [0, 0], sizes = [1, 8], strides = [1, 1]} : vector<8x8xf32> to vector<1x8xf32>
    %31 = vector.broadcast %30 : vector<1x8xf32> to vector<8x8xf32>
    %32 = arith.mulf %29, %31 : vector<8x8xf32>
    %33 = vector.extract_strided_slice %10 {offsets = [0, 0], sizes = [1, 8], strides = [1, 1]} : vector<8x8xf32> to vector<1x8xf32>
    %34 = vector.broadcast %33 : vector<1x8xf32> to vector<8x8xf32>
    %35 = arith.mulf %29, %34 : vector<8x8xf32>
    %36 = tpu.concatenate %32, %35 in 0 : vector<8x8xf32>, vector<8x8xf32> -> vector<16x8xf32>
    %c0_7 = arith.constant 0 : index
    %c0_8 = arith.constant 0 : index
    %37 = vector.load %arg4[%c0_7, %c0_8] : memref<1x16xf32, #tpu.memory_space<vmem>>, vector<1x16xf32>
    %cst_9 = arith.constant dense<0.000000e+00> : vector<1x8xf32>
    %38 = tpu.matmul %37, %36, %cst_9 {dimension_numbers = #tpu.dot_dimension_numbers<[1], [0], [0], [1], [0, 0, 1, 1], [], []>} : vector<1x16xf32>, vector<16x8xf32>, vector<1x8xf32> -> vector<1x8xf32>
    %c0_10 = arith.constant 0 : index
    %c0_11 = arith.constant 0 : index
    %39 = vector.load %arg5[%c0_10, %c0_11] : memref<1x8xf32, #tpu.memory_space<vmem>>, vector<1x8xf32>
    tpu.vector_store %arg5[%c0_10, %c0_11], %38 {strides = array<i32>} : memref<1x8xf32, #tpu.memory_space<vmem>>, vector<1x8xf32>,
    return
  }
  func.func @transform_0(%arg0: i32) -> (i32, i32) {
    %c0_i32 = arith.constant 0 : i32
    %c0_i32_0 = arith.constant 0 : i32
    return %arg0, %c0_i32 : i32, i32
  }
  func.func @transform_1(%arg0: i32) -> (i32, i32) {
    %c0_i32 = arith.constant 0 : i32
    %c0_i32_0 = arith.constant 0 : i32
    %c0_i32_1 = arith.constant 0 : i32
    return %c0_i32, %c0_i32_0 : i32, i32
  }
  func.func @transform_2(%arg0: i32) -> (i32, i32) {
    %c0_i32 = arith.constant 0 : i32
    %c0_i32_0 = arith.constant 0 : i32
    %c0_i32_1 = arith.constant 0 : i32
    return %c0_i32, %c0_i32_0 : i32, i32
  }
  func.func @transform_3(%arg0: i32) -> (i32, i32) {
    %c0_i32 = arith.constant 0 : i32
    %c0_i32_0 = arith.constant 0 : i32
    %c0_i32_1 = arith.constant 0 : i32
    return %c0_i32, %c0_i32_0 : i32, i32
  }
  func.func @transform_4(%arg0: i32) -> (i32, i32) {
    %c0_i32 = arith.constant 0 : i32
    %c0_i32_0 = arith.constant 0 : i32
    return %c0_i32, %arg0 : i32, i32
  }
}

</mosaic_0001>

<llo_original>
// kernel: tpu_custom_call.1
$region0: #{tpu_custom_call.1}
  #allocation0 [shape = 'u32[]', space=smem, size = 0x4, offset = 0x4, fixed_abs, tag = 'smem constant byte address 0x4 - core index']
  #allocation1 [shape = 'u32[144,128]{1,0:T(1,128)}', space=vmem, size = 0x12000, scoped, tag = 'internal scratch']
  %s0 = inlined_call_operand.vmem [shape: f32[8,32], index: 0, kind: input, shape index: {}]
  %s1 = inlined_call_operand.hbm [shape: f32[8,32], index: 1, kind: input, shape index: {}]
  %s2 = inlined_call_operand.vmem [shape: f32[8,1], index: 2, kind: input, shape index: {}]
  %s3 = inlined_call_operand.vmem [shape: f32[1,16], index: 3, kind: input, shape index: {}]
  %s4 = inlined_call_operand.hbm [shape: f32[1,8], index: 4, kind: output, shape index: {}]
  %s5 = sld [smem:[#allocation0]]
  $region30: #{tpu_custom_call.1} parent=0
    _
  %s7 = ssub.s32 1, %s5
  %s8 = scalar_select 0, %s7, %s5
  $region1: #{tpu_custom_call.1} parent=0
    #allocation2 [shape = 'u8[4096]{0}', space=vmem, size = 0x1000, scoped, tag = 'input window, operand 1, single buffered']
    #allocation3 [shape = 's32[1]{0}', space=sflag, size = 0x4, scoped, tag = 'scoped memory for tpu_custom_call.1']
    #allocation4 [shape = 's32[1]{0}', space=sflag, size = 0x4, scoped, tag = 'scoped memory for tpu_custom_call.1']
    #allocation5 [shape = 'u8[512]{0}', space=vmem, size = 0x400, scoped, tag = 'output window, operand 0, single buffered']
    %9 = vsyncpa [#allocation3], 0
    %10 = vsyncpa [#allocation4], 0
    // Predicated region
    $region2: #{tpu_custom_call.1} parent=1 // pred_check
      _
    $region3: #{tpu_custom_call.1} parent=1 // pred_check_branch
      %12 = sbr.rel (0) target = $region5
    $region4: #{tpu_custom_call.1} parent=1 // pred_region
      _
    $region5: #{tpu_custom_call.1} parent=1 // pred_fallthru
      _
    // Predicated region
    $region6: #{tpu_custom_call.1} parent=1 // pred_check
      _
    $region7: #{tpu_custom_call.1} parent=1 // pred_check_branch
      %14 = sbr.rel (0) target = $region9
    $region8: #{tpu_custom_call.1} parent=1 // pred_region
      %s16 = ssub.s32 128, 128
      %17 = vsyncadd [#allocation3], %s16
      %s19 = sshll.u32 [#allocation2], 4
      %s20 = int_to_ptr.vmem [resolvable:$true] %s19
      %22 = dma.hbm_to_vmem [thread:$0]  %s1, 128, %s20, [#allocation3]
    $region9: #{tpu_custom_call.1} parent=1 // pred_fallthru
      _
    // Predicated region
    $region10: #{tpu_custom_call.1} parent=1 // pred_check
      _
    $region11: #{tpu_custom_call.1} parent=1 // pred_check_branch
      %24 = sbr.rel (0) target = $region13
    $region12: #{tpu_custom_call.1} parent=1 // pred_region
      _
    $region13: #{tpu_custom_call.1} parent=1 // pred_fallthru
      _
    // Predicated region
    $region14: #{tpu_custom_call.1} parent=1 // pred_check
      _
    $region15: #{tpu_custom_call.1} parent=1 // pred_check_branch
      %26 = sbr.rel (0) target = $region17
    $region16: #{tpu_custom_call.1} parent=1 // pred_region
      _
    $region17: #{tpu_custom_call.1} parent=1 // pred_fallthru
      _
    // Predicated region
    $region18: #{tpu_custom_call.1} parent=1 // pred_check
      _
    $region19: #{tpu_custom_call.1} parent=1 // pred_check_branch
      %28 = sbr.rel (0) target = $region21
    $region20: #{tpu_custom_call.1} parent=1 // pred_region
      %29 = dma.done [#allocation3], 128
    $region21: #{tpu_custom_call.1} parent=1 // pred_fallthru
      _
    %v30 = vld [vmem:[#allocation2] sm:$0xff]
    %v31 = vld [vmem:[%s0] sm:$0xff]
    %v32 = vld [vmem:[%s2] sm:$0xff]
    %34 = vset.pattern.permute.xlu0 0
    %35 = vperm.xlu0 %34, %v32
    %v36 = vpop.permute.xlu0 %35
    %vm38 = vcmask 261120
    %v40 = vsel %vm38, %v30, 0
    %v43 = vsel %vm38, %v31, 0
    %45 = vmatprep.subr.mxu0 0.0
    %46 = vmatpush1.xpose.msra.mxu0 0.0
    %47 = vmatprep.subr.mxu0 0.0
    %48 = vmatpush1.xpose.msra.mxu0 0.0
    %49 = vmatprep.subr.mxu0 0.0
    %50 = vmatpush1.xpose.msra.mxu0 0.0
    %51 = vmatprep.subr.mxu0 0.0
    %52 = vmatpush1.xpose.msra.mxu0 0.0
    %53 = vmatprep.subr.mxu0 0.0
    %54 = vmatpush1.xpose.msra.mxu0 0.0
    %55 = vmatprep.subr.mxu0 0.0
    %56 = vmatpush1.xpose.msra.mxu0 0.0
    %57 = vmatprep.subr.mxu0 0.0
    %58 = vmatpush1.xpose.msra.mxu0 0.0
    %59 = vmatprep.subr.mxu0 0.0
    %60 = vmatpush1.xpose.msra.mxu0 0.0
    %61 = vmatprep.subr.mxu0 0.0
    %62 = vmatpush1.xpose.msra.mxu0 0.0
    %63 = vmatprep.subr.mxu0 0.0
    %64 = vmatpush1.xpose.msra.mxu0 0.0
    %65 = vmatprep.subr.mxu0 0.0
    %66 = vmatpush1.xpose.msra.mxu0 0.0
    %67 = vmatprep.subr.mxu0 0.0
    %68 = vmatpush1.xpose.msra.mxu0 0.0
    %69 = vmatprep.subr.mxu0 0.0
    %70 = vmatpush1.xpose.msra.mxu0 0.0
    %71 = vmatprep.subr.mxu0 0.0
    %72 = vmatpush1.xpose.msra.mxu0 0.0
    %73 = vmatprep.subr.mxu0 0.0
    %74 = vmatpush1.xpose.msra.mxu0 0.0
    %75 = vmatprep.subr.mxu0 0.0
    %76 = vmatpush1.xpose.msra.mxu0 %v43
    %77 = vmatprep.subr.mxu0 0.0
    %78 = vmatpush2.xpose.msra.mxu0 0.0
    %79 = vmatprep.subr.mxu0 0.0
    %80 = vmatpush2.xpose.msra.mxu0 0.0
    %81 = vmatprep.subr.mxu0 0.0
    %82 = vmatpush2.xpose.msra.mxu0 0.0
    %83 = vmatprep.subr.mxu0 0.0
    %84 = vmatpush2.xpose.msra.mxu0 0.0
    %85 = vmatprep.subr.mxu0 0.0
    %86 = vmatpush2.xpose.msra.mxu0 0.0
    %87 = vmatprep.subr.mxu0 0.0
    %88 = vmatpush2.xpose.msra.mxu0 0.0
    %89 = vmatprep.subr.mxu0 0.0
    %90 = vmatpush2.xpose.msra.mxu0 0.0
    %91 = vmatprep.subr.mxu0 0.0
    %92 = vmatpush2.xpose.msra.mxu0 0.0
    %93 = vmatprep.subr.mxu0 0.0
    %94 = vmatpush2.xpose.msra.mxu0 0.0
    %95 = vmatprep.subr.mxu0 0.0
    %96 = vmatpush2.xpose.msra.mxu0 0.0
    %97 = vmatprep.subr.mxu0 0.0
    %98 = vmatpush2.xpose.msra.mxu0 0.0
    %99 = vmatprep.subr.mxu0 0.0
    %100 = vmatpush2.xpose.msra.mxu0 0.0
    %101 = vmatprep.subr.mxu0 0.0
    %102 = vmatpush2.xpose.msra.mxu0 0.0
    %103 = vmatprep.subr.mxu0 0.0
    %104 = vmatpush2.xpose.msra.mxu0 0.0
    %105 = vmatprep.subr.mxu0 0.0
    %106 = vmatpush2.xpose.msra.mxu0 0.0
    %107 = vmatprep.subr.mxu0 0.0
    %108 = vmatpush2.xpose.msra.mxu0 0.0
    %109 = vmatprep.mubr.f32.mxu0 0.0
    %110 = vmatmul.mubr.f32.gmra.mxu0 %v40
    %v111 = vpop.f32.mrf.mxu0
    %v112 = vadd.f32 %v36, %v111
    %v113 = vpop.f32.mrf.mxu0
    %114 = vdwg.mxu0
    %v115 = vxor.u32 %v112, 2147483648
    %v116 = vmul.f32 %v115, 1.442695
    %v117 = vpow.pop %v116
    %v118 = vadd.f32 %v117, 1.0
    %v119 = vrcp.pop %v118
    %v120 = vmul.f32 1.0, %v119
    %v121 = vsub.f32 1.0, %v120
    %v123 = vrot.slane %v121, 3
    %v126 = vrot.slane %v120, 2
    %vm128 = vcmask 1040384
    %v129 = vsel %vm128, %v123, %v126
    %v130 = vlaneseq
    %v131 = vshrl.u32 %v130, 7
    %v132 = vsub.s32 2, %v131
    %v133 = vrot.slane %v121, %v132
    %v134 = vmul.f32 %v129, %v133
    %v135 = vlaneseq
    %v136 = vshrl.u32 %v135, 7
    %v137 = vsub.s32 2, %v136
    %v138 = vrot.slane %v120, %v137
    %v139 = vmul.f32 %v129, %v138
    %v141 = vrot.slane %v139, 6
    %vm143 = vcmask 1041408
    %v144 = vsel %vm143, %v134, %v141
    %v145 = vlaneseq
    %v146 = vshrl.u32 %v145, 7
    %v147 = vsub.s32 1, %v146
    %v148 = vrot.slane %v121, %v147
    %v149 = vmul.f32 %v144, %v148
    %v150 = vlaneseq
    %v151 = vshrl.u32 %v150, 7
    %v152 = vsub.s32 1, %v151
    %v153 = vrot.slane %v120, %v152
    %v154 = vmul.f32 %v144, %v153
    %v156 = vrot.slane %v154, 4
    %vm158 = vcmask 1043456
    %v159 = vsel %vm158, %v149, %v156
    %v160 = vlaneseq
    %v161 = vshrl.u32 %v160, 7
    %v162 = vsub.s32 0, %v161
    %v163 = vrot.slane %v121, %v162
    %v164 = vmul.f32 %v159, %v163
    %v165 = vlaneseq
    %v166 = vshrl.u32 %v165, 7
    %v167 = vsub.s32 0, %v166
    %v168 = vrot.slane %v120, %v167
    %v169 = vmul.f32 %v159, %v168
    %v170 = vld [vmem:[%s3] sm:$0x1]
    %vm171 = vcmask 130048
    %v173 = vsel %vm171, %v170, 0
    %175 = vmatprep.subr.mxu0 0.0
    %176 = vmatpush1.msra.mxu0 0.0
    %177 = vmatprep.subr.mxu0 0.0
    %178 = vmatpush1.msra.mxu0 0.0
    %179 = vmatprep.subr.mxu0 0.0
    %180 = vmatpush1.msra.mxu0 0.0
    %181 = vmatprep.subr.mxu0 0.0
    %182 = vmatpush1.msra.mxu0 0.0
    %183 = vmatprep.subr.mxu0 0.0
    %184 = vmatpush1.msra.mxu0 0.0
    %185 = vmatprep.subr.mxu0 0.0
    %186 = vmatpush1.msra.mxu0 0.0
    %187 = vmatprep.subr.mxu0 0.0
    %188 = vmatpush1.msra.mxu0 0.0
    %189 = vmatprep.subr.mxu0 0.0
    %190 = vmatpush1.msra.mxu0 0.0
    %191 = vmatprep.subr.mxu0 0.0
    %192 = vmatpush1.msra.mxu0 0.0
    %193 = vmatprep.subr.mxu0 0.0
    %194 = vmatpush1.msra.mxu0 0.0
    %195 = vmatprep.subr.mxu0 0.0
    %196 = vmatpush1.msra.mxu0 0.0
    %197 = vmatprep.subr.mxu0 0.0
    %198 = vmatpush1.msra.mxu0 0.0
    %199 = vmatprep.subr.mxu0 0.0
    %200 = vmatpush1.msra.mxu0 0.0
    %201 = vmatprep.subr.mxu0 0.0
    %202 = vmatpush1.msra.mxu0 0.0
    %203 = vmatprep.subr.mxu0 0.0
    %204 = vmatpush1.msra.mxu0 %v169
    %205 = vmatprep.subr.mxu0 0.0
    %206 = vmatpush1.msra.mxu0 %v164
    %207 = vmatprep.subr.mxu0 0.0
    %208 = vmatpush2.msra.mxu0 0.0
    %209 = vmatprep.subr.mxu0 0.0
    %210 = vmatpush2.msra.mxu0 0.0
    %211 = vmatprep.subr.mxu0 0.0
    %212 = vmatpush2.msra.mxu0 0.0
    %213 = vmatprep.subr.mxu0 0.0
    %214 = vmatpush2.msra.mxu0 0.0
    %215 = vmatprep.subr.mxu0 0.0
    %216 = vmatpush2.msra.mxu0 0.0
    %217 = vmatprep.subr.mxu0 0.0
    %218 = vmatpush2.msra.mxu0 0.0
    %219 = vmatprep.subr.mxu0 0.0
    %220 = vmatpush2.msra.mxu0 0.0
    %221 = vmatprep.subr.mxu0 0.0
    %222 = vmatpush2.msra.mxu0 0.0
    %223 = vmatprep.subr.mxu0 0.0
    %224 = vmatpush2.msra.mxu0 0.0
    %225 = vmatprep.subr.mxu0 0.0
    %226 = vmatpush2.msra.mxu0 0.0
    %227 = vmatprep.subr.mxu0 0.0
    %228 = vmatpush2.msra.mxu0 0.0
    %229 = vmatprep.subr.mxu0 0.0
    %230 = vmatpush2.msra.mxu0 0.0
    %231 = vmatprep.subr.mxu0 0.0
    %232 = vmatpush2.msra.mxu0 0.0
    %233 = vmatprep.subr.mxu0 0.0
    %234 = vmatpush2.msra.mxu0 0.0
    %235 = vmatprep.subr.mxu0 0.0
    %236 = vmatpush2.msra.mxu0 0.0
    %237 = vmatprep.subr.mxu0 0.0
    %238 = vmatpush2.msra.mxu0 0.0
    %239 = vmatprep.mubr.f32.mxu0 0.0
    %240 = vmatmul.mubr.f32.gmra.mxu0 %v173
    %v241 = vpop.f32.mrf.mxu0
    %v242 = vadd.f32 0.0, %v241
    %v243 = vpop.f32.mrf.mxu0
    %244 = vdwg.mxu0
    %vm245 = vcmask 57344
    %246 = vst.msk [vmem:[#allocation5] sm:$0x1] %vm245, %v242
    // Predicated region
    $region22: #{tpu_custom_call.1} parent=1 // pred_check
      _
    $region23: #{tpu_custom_call.1} parent=1 // pred_check_branch
      %248 = sbr.rel (0) target = $region25
    $region24: #{tpu_custom_call.1} parent=1 // pred_region
      %s250 = ssub.s32 16, 16
      %251 = vsyncadd [#allocation4], %s250
      %s253 = sshll.u32 [#allocation5], 4
      %s254 = int_to_ptr.vmem [resolvable:$true] %s253
      %256 = dma.vmem_to_hbm [thread:$0]  %s254, 16, %s4, [#allocation4]
    $region25: #{tpu_custom_call.1} parent=1 // pred_fallthru
      _
    // Predicated region
    $region26: #{tpu_custom_call.1} parent=1 // pred_check
      _
    $region27: #{tpu_custom_call.1} parent=1 // pred_check_branch
      %258 = sbr.rel (0) target = $region29
    $region28: #{tpu_custom_call.1} parent=1 // pred_region
      %259 = dma.done [#allocation4], 16
    $region29: #{tpu_custom_call.1} parent=1 // pred_fallthru
      _
    %260 = vsyncpa [#allocation3], 1
    %261 = vsyncpa [#allocation4], 1

</llo_original>
